<compile_context>
chip_gen: v7x
topology: tpu7x:2x2x1
jax: 0.10.0
libtpu: 0.0.40
codegen_flags: <defaults>
</compile_context>

<pallas_src>
import functools

import jax
import jax.numpy as jnp
from jax.experimental import pallas as pl
from jax.experimental.pallas import tpu as pltpu


def _mlp_kernel(x_ref, w1_ref, b1_ref, w2_ref, b2_ref, w3c_ref, b3_ref, o_ref):
    """Fused 3-layer MLP, ReLU after every layer. Batch lives on the lane axis."""
    # layer 1: bf16 operands, f32 accumulation        (H1, Bt)
    h1 = jnp.dot(w1_ref[...], x_ref[...], preferred_element_type=jnp.float32)
    h1 = jnp.maximum(h1 + b1_ref[...], 0.0)
    # layer 2: f32 matmul                             (H2, Bt)
    h2 = jnp.dot(w2_ref[...], h1, preferred_element_type=jnp.float32)
    h2 = jnp.maximum(h2 + b2_ref[...], 0.0)
    # layer 3: (H2 -> 1) as VPU multiply + sublane reduce, avoids a 1-lane MXU
    # result column and a masked 1-lane store.        (1, Bt)
    h3 = jnp.sum(w3c_ref[...] * h2, axis=0, keepdims=True) + b3_ref[...]
    o_ref[...] = jnp.maximum(h3, 0.0).astype(o_ref.dtype)


def _round_up(n, m):
    return ((n + m - 1) // m) * m


@functools.partial(jax.jit, static_argnames=("block_b",))
def irl_neighbor_forward(x, params, *, block_b=2048):
    """x: (B, num_features) float32.  params: PyTorch-layout weights/biases (f32)."""
    B, F = x.shape
    w1, b1 = params["w1"], params["b1"]   # (H1, F), (H1,)
    w2, b2 = params["w2"], params["b2"]   # (H2, H1), (H2,)
    w3, b3 = params["w3"], params["b3"]   # (1, H2), (1,)
    H1, H2 = w1.shape[0], w2.shape[0]

    # Lane-dense batch tile: multiple of 128, capped at block_b; pad B up to a
    # whole number of tiles (padding columns are computed then sliced away).
    block = _round_up(min(block_b, _round_up(B, 128)), 128)
    B_pad = _round_up(B, block)
    grid = (B_pad // block,)

    # Wrapper-side layout plumbing (fused by XLA): bf16 for the big operand,
    # batch-in-lanes transpose, biases / fc3 weight as column vectors.
    xT = jnp.pad(x.astype(jnp.bfloat16).T, ((0, 0), (0, B_pad - B)))  # (F, B_pad)
    w1b = w1.astype(jnp.bfloat16)                                     # (H1, F)
    b1c = b1.reshape(H1, 1)
    b2c = b2.reshape(H2, 1)
    w3c = w3.reshape(H2, 1)
    b3c = b3.reshape(1, 1)

    full = lambda i: (0, 0)
    out = pl.pallas_call(
        _mlp_kernel,
        out_shape=jax.ShapeDtypeStruct((1, B_pad), jnp.float32),
        grid_spec=pltpu.PrefetchScalarGridSpec(
            num_scalar_prefetch=0,
            grid=grid,
            in_specs=[
                pl.BlockSpec((F, block), lambda i: (0, i)),   # x tile (batch in lanes)
                pl.BlockSpec((H1, F), full),                  # fc1 weight (out, in), bf16
                pl.BlockSpec((H1, 1), full),                  # fc1 bias column
                pl.BlockSpec((H2, H1), full),                 # fc2 weight
                pl.BlockSpec((H2, 1), full),                  # fc2 bias column
                pl.BlockSpec((H2, 1), full),                  # fc3 weight column
                pl.BlockSpec((1, 1), full),                   # fc3 bias
            ],
            out_specs=pl.BlockSpec((1, block), lambda i: (0, i)),
        ),
        compiler_params=pltpu.CompilerParams(
            dimension_semantics=("parallel",)),               # megacore shard on v7x
    )(xT, w1b, b1c, w2, b2c, w3c, b3c)

    return out[:, :B].T                                        # (B, 1)


def init_params(key, num_features, num_base_features):
    """Synthetic init matching the PyTorch module (weights ~ N(1, 0.1))."""
    h1 = num_features - 1 * num_base_features
    h2 = num_features - 2 * num_base_features
    ks = jax.random.split(key, 7)

    def w(k, out_f, in_f):
        return 1.0 + 0.1 * jax.random.normal(k, (out_f, in_f), jnp.float32)

    def b(k, out_f, in_f):
        bound = 1.0 / jnp.sqrt(in_f)
        return jax.random.uniform(k, (out_f,), jnp.float32, -bound, bound)

    return {
        "w1": w(ks[0], h1, num_features), "b1": b(ks[1], h1, num_features),
        "w2": w(ks[2], h2, h1),           "b2": b(ks[3], h2, h1),
        "w3": w(ks[4], 1, h2),            "b3": b(ks[5], 1, h2),
        "lamb": jnp.array([1.24744], jnp.float32),   # unused in forward
    }


def get_lambda(params):
    # mirrors IRL_Neighbor_Model.get_lambda (pure-JAX glue, no kernel needed)
    return jnp.clip(params["lamb"], 0.2)


def _reference_forward(x, params):
    """Matches the kernel's numerics: bf16 x / fc1 weight, f32 everything else."""
    xb = x.astype(jnp.bfloat16)
    w1b = params["w1"].astype(jnp.bfloat16)
    h = jnp.maximum(
        jnp.dot(xb, w1b.T, preferred_element_type=jnp.float32) + params["b1"], 0.0)
    h = jnp.maximum(h @ params["w2"].T + params["b2"], 0.0)
    h = jnp.maximum(h @ params["w3"].T + params["b3"], 0.0)
    return h


if __name__ == "__main__":
    num_features = 32
    num_base_features = 8
    batch = 16

    key = jax.random.PRNGKey(0)
    kx, kp = jax.random.split(key)
    x = jax.random.normal(kx, (batch, num_features), jnp.float32)
    params = init_params(kp, num_features, num_base_features)

    out = irl_neighbor_forward(x, params)          # demo: one 128-lane grid step
    out = jax.block_until_ready(out)

    ref = _reference_forward(x, params)
    assert out.shape == (batch, 1), out.shape
    assert jnp.allclose(out, ref, atol=1e-2, rtol=1e-2), "mismatch vs reference"

    _ = jax.block_until_ready(get_lambda(params))

    print("KERNEL_OK")
</pallas_src>

<mosaic_0001>
module attributes {stable_mosaic.version = 11 : i64} {
  func.func @_mlp_kernel(%arg0: i32, %arg1: memref<32x128xbf16, #tpu.memory_space<vmem>>, %arg2: memref<24x32xbf16, #tpu.memory_space<vmem>>, %arg3: memref<24x1xf32, #tpu.memory_space<vmem>>, %arg4: memref<16x24xf32, #tpu.memory_space<vmem>>, %arg5: memref<16x1xf32, #tpu.memory_space<vmem>>, %arg6: memref<16x1xf32, #tpu.memory_space<vmem>>, %arg7: memref<1x1xf32, #tpu.memory_space<vmem>>, %arg8: memref<1x128xf32, #tpu.memory_space<vmem>>) attributes {dimension_semantics = [#tpu.dimension_semantics<parallel>], iteration_bounds = array<i64: 1>, scalar_prefetch = 0 : i64, scratch_operands = 0 : i64, tpu.core_type = #tpu.core_type<tc>, window_params = [{transform_indices = @transform_0, window_bounds = array<i64: 32, 128>}, {pipeline_mode = #tpu.pipeline_mode<synchronous>, transform_indices = @transform_1, window_bounds = array<i64: 24, 32>}, {pipeline_mode = #tpu.pipeline_mode<synchronous>, transform_indices = @transform_2, window_bounds = array<i64: 24, 1>}, {pipeline_mode = #tpu.pipeline_mode<synchronous>, transform_indices = @transform_3, window_bounds = array<i64: 16, 24>}, {pipeline_mode = #tpu.pipeline_mode<synchronous>, transform_indices = @transform_4, window_bounds = array<i64: 16, 1>}, {pipeline_mode = #tpu.pipeline_mode<synchronous>, transform_indices = @transform_5, window_bounds = array<i64: 16, 1>}, {pipeline_mode = #tpu.pipeline_mode<synchronous>, transform_indices = @transform_6, window_bounds = array<i64: 1, 1>}, {transform_indices = @transform_7, window_bounds = array<i64: 1, 128>}]} {
    %c0 = arith.constant 0 : index
    %c0_0 = arith.constant 0 : index
    %0 = vector.load %arg2[%c0, %c0_0] : memref<24x32xbf16, #tpu.memory_space<vmem>>, vector<24x32xbf16>
    %c0_1 = arith.constant 0 : index
    %c0_2 = arith.constant 0 : index
    %1 = vector.load %arg1[%c0_1, %c0_2] : memref<32x128xbf16, #tpu.memory_space<vmem>>, vector<32x128xbf16>
    %cst = arith.constant dense<0.000000e+00> : vector<24x128xf32>
    %2 = tpu.matmul %0, %1, %cst {dimension_numbers = #tpu.dot_dimension_numbers<[1], [0], [0], [1], [0, 0, 1, 1], [], []>} : vector<24x32xbf16>, vector<32x128xbf16>, vector<24x128xf32> -> vector<24x128xf32>
    %c0_3 = arith.constant 0 : index
    %c0_4 = arith.constant 0 : index
    %3 = vector.load %arg3[%c0_3, %c0_4] : memref<24x1xf32, #tpu.memory_space<vmem>>, vector<24x1xf32>
    %4 = vector.broadcast %3 : vector<24x1xf32> to vector<24x128xf32>
    %5 = arith.addf %2, %4 : vector<24x128xf32>
    %cst_5 = arith.constant 0.000000e+00 : f32
    %6 = vector.broadcast %cst_5 : f32 to vector<24x128xf32>
    %7 = arith.maximumf %5, %6 : vector<24x128xf32>
    %c0_6 = arith.constant 0 : index
    %c0_7 = arith.constant 0 : index
    %8 = vector.load %arg4[%c0_6, %c0_7] : memref<16x24xf32, #tpu.memory_space<vmem>>, vector<16x24xf32>
    %cst_8 = arith.constant dense<0.000000e+00> : vector<16x128xf32>
    %9 = tpu.matmul %8, %7, %cst_8 {dimension_numbers = #tpu.dot_dimension_numbers<[1], [0], [0], [1], [0, 0, 1, 1], [], []>} : vector<16x24xf32>, vector<24x128xf32>, vector<16x128xf32> -> vector<16x128xf32>
    %c0_9 = arith.constant 0 : index
    %c0_10 = arith.constant 0 : index
    %10 = vector.load %arg5[%c0_9, %c0_10] : memref<16x1xf32, #tpu.memory_space<vmem>>, vector<16x1xf32>
    %11 = vector.broadcast %10 : vector<16x1xf32> to vector<16x128xf32>
    %12 = arith.addf %9, %11 : vector<16x128xf32>
    %cst_11 = arith.constant 0.000000e+00 : f32
    %13 = vector.broadcast %cst_11 : f32 to vector<16x128xf32>
    %14 = arith.maximumf %12, %13 : vector<16x128xf32>
    %c0_12 = arith.constant 0 : index
    %c0_13 = arith.constant 0 : index
    %15 = vector.load %arg6[%c0_12, %c0_13] : memref<16x1xf32, #tpu.memory_space<vmem>>, vector<16x1xf32>
    %16 = vector.broadcast %15 : vector<16x1xf32> to vector<16x128xf32>
    %17 = arith.mulf %16, %14 : vector<16x128xf32>
    %cst_14 = arith.constant dense<0.000000e+00> : vector<128xf32>
    %18 = vector.multi_reduction <add>, %17, %cst_14 [0] : vector<16x128xf32> to vector<128xf32>
    %19 = vector.shape_cast %18 : vector<128xf32> to vector<1x128xf32>
    %c0_15 = arith.constant 0 : index
    %c0_16 = arith.constant 0 : index
    %20 = vector.load %arg7[%c0_15, %c0_16] : memref<1x1xf32, #tpu.memory_space<vmem>>, vector<1x1xf32>
    %21 = vector.broadcast %20 : vector<1x1xf32> to vector<1x128xf32>
    %22 = arith.addf %19, %21 : vector<1x128xf32>
    %cst_17 = arith.constant 0.000000e+00 : f32
    %23 = vector.broadcast %cst_17 : f32 to vector<1x128xf32>
    %24 = arith.maximumf %22, %23 : vector<1x128xf32>
    %c0_18 = arith.constant 0 : index
    %c0_19 = arith.constant 0 : index
    %25 = vector.load %arg8[%c0_18, %c0_19] : memref<1x128xf32, #tpu.memory_space<vmem>>, vector<1x128xf32>
    tpu.vector_store %arg8[%c0_18, %c0_19], %24 {strides = array<i32>} : memref<1x128xf32, #tpu.memory_space<vmem>>, vector<1x128xf32>,
    return
  }
  func.func @transform_0(%arg0: i32) -> (i32, i32) {
    %c0_i32 = arith.constant 0 : i32
    %c0_i32_0 = arith.constant 0 : i32
    return %c0_i32, %arg0 : i32, i32
  }
  func.func @transform_1(%arg0: i32) -> (i32, i32) {
    %c0_i32 = arith.constant 0 : i32
    %c0_i32_0 = arith.constant 0 : i32
    %c0_i32_1 = arith.constant 0 : i32
    return %c0_i32, %c0_i32_0 : i32, i32
  }
  func.func @transform_2(%arg0: i32) -> (i32, i32) {
    %c0_i32 = arith.constant 0 : i32
    %c0_i32_0 = arith.constant 0 : i32
    %c0_i32_1 = arith.constant 0 : i32
    return %c0_i32, %c0_i32_0 : i32, i32
  }
  func.func @transform_3(%arg0: i32) -> (i32, i32) {
    %c0_i32 = arith.constant 0 : i32
    %c0_i32_0 = arith.constant 0 : i32
    %c0_i32_1 = arith.constant 0 : i32
    return %c0_i32, %c0_i32_0 : i32, i32
  }
  func.func @transform_4(%arg0: i32) -> (i32, i32) {
    %c0_i32 = arith.constant 0 : i32
    %c0_i32_0 = arith.constant 0 : i32
    %c0_i32_1 = arith.constant 0 : i32
    return %c0_i32, %c0_i32_0 : i32, i32
  }
  func.func @transform_5(%arg0: i32) -> (i32, i32) {
    %c0_i32 = arith.constant 0 : i32
    %c0_i32_0 = arith.constant 0 : i32
    %c0_i32_1 = arith.constant 0 : i32
    return %c0_i32, %c0_i32_0 : i32, i32
  }
  func.func @transform_6(%arg0: i32) -> (i32, i32) {
    %c0_i32 = arith.constant 0 : i32
    %c0_i32_0 = arith.constant 0 : i32
    %c0_i32_1 = arith.constant 0 : i32
    return %c0_i32, %c0_i32_0 : i32, i32
  }
  func.func @transform_7(%arg0: i32) -> (i32, i32) {
    %c0_i32 = arith.constant 0 : i32
    %c0_i32_0 = arith.constant 0 : i32
    return %c0_i32, %arg0 : i32, i32
  }
}

</mosaic_0001>

<llo_original>
// kernel: irl_neighbor_forward.1
$region0: #{irl_neighbor_forward.1}
  #allocation0 [shape = 'u32[]', space=smem, size = 0x4, offset = 0x4, fixed_abs, tag = 'smem constant byte address 0x4 - core index']
  #allocation1 [shape = 'u32[144,128]{1,0:T(1,128)}', space=vmem, size = 0x12000, scoped, tag = 'internal scratch']
  #allocation2 [shape = 'f32[1,1]{1,0:T(1,128)S(1)}', space=vmem, size = 0x200, scoped, tag = 'scoped memory for irl_neighbor_forward.1']
  %s0 = inlined_call_operand.vmem [shape: bf16[32,128], index: 0, kind: input, shape index: {}]
  %s1 = inlined_call_operand.vmem [shape: bf16[24,32], index: 1, kind: input, shape index: {}]
  %s2 = inlined_call_operand.vmem [shape: f32[24,1], index: 2, kind: input, shape index: {}]
  %s3 = inlined_call_operand.vmem [shape: f32[16,24], index: 3, kind: input, shape index: {}]
  %s4 = inlined_call_operand.vmem [shape: f32[16,1], index: 4, kind: input, shape index: {}]
  %s5 = inlined_call_operand.vmem [shape: f32[16,1], index: 5, kind: input, shape index: {}]
  %s6 = inlined_call_operand.<no memory space> [shape: f32[1,1], index: 6, kind: input, shape index: {}]
  %s7 = inlined_call_operand.vmem [shape: f32[1,128], index: 7, kind: output, shape index: {}]
  %s8 = sld [smem:[#allocation0]]
  $region38: #{irl_neighbor_forward.1} parent=0
    _
  %s10 = ssub.s32 1, %s8
  %s11 = scalar_select 0, %s10, %s8
  %v12 = vstv %s6
  %13 = vst [vmem:[#allocation2] sm:$0x1] %v12
  // Predicated region
  $region2: #{irl_neighbor_forward.1} parent=0 // pred_check
    _
  $region3: #{irl_neighbor_forward.1} parent=0 // pred_check_branch
    %15 = sbr.rel (0) target = $region5
  $region4: #{irl_neighbor_forward.1} parent=0 // pred_region
    _
  $region5: #{irl_neighbor_forward.1} parent=0 // pred_fallthru
    _
  // Predicated region
  $region6: #{irl_neighbor_forward.1} parent=0 // pred_check
    _
  $region7: #{irl_neighbor_forward.1} parent=0 // pred_check_branch
    %17 = sbr.rel (0) target = $region9
  $region8: #{irl_neighbor_forward.1} parent=0 // pred_region
    _
  $region9: #{irl_neighbor_forward.1} parent=0 // pred_fallthru
    _
  // Predicated region
  $region10: #{irl_neighbor_forward.1} parent=0 // pred_check
    _
  $region11: #{irl_neighbor_forward.1} parent=0 // pred_check_branch
    %19 = sbr.rel (0) target = $region13
  $region12: #{irl_neighbor_forward.1} parent=0 // pred_region
    _
  $region13: #{irl_neighbor_forward.1} parent=0 // pred_fallthru
    _
  // Predicated region
  $region14: #{irl_neighbor_forward.1} parent=0 // pred_check
    _
  $region15: #{irl_neighbor_forward.1} parent=0 // pred_check_branch
    %21 = sbr.rel (0) target = $region17
  $region16: #{irl_neighbor_forward.1} parent=0 // pred_region
    _
  $region17: #{irl_neighbor_forward.1} parent=0 // pred_fallthru
    _
  // Predicated region
  $region18: #{irl_neighbor_forward.1} parent=0 // pred_check
    _
  $region19: #{irl_neighbor_forward.1} parent=0 // pred_check_branch
    %23 = sbr.rel (0) target = $region21
  $region20: #{irl_neighbor_forward.1} parent=0 // pred_region
    _
  $region21: #{irl_neighbor_forward.1} parent=0 // pred_fallthru
    _
  // Predicated region
  $region22: #{irl_neighbor_forward.1} parent=0 // pred_check
    _
  $region23: #{irl_neighbor_forward.1} parent=0 // pred_check_branch
    %25 = sbr.rel (0) target = $region25
  $region24: #{irl_neighbor_forward.1} parent=0 // pred_region
    _
  $region25: #{irl_neighbor_forward.1} parent=0 // pred_fallthru
    _
  // Predicated region
  $region26: #{irl_neighbor_forward.1} parent=0 // pred_check
    _
  $region27: #{irl_neighbor_forward.1} parent=0 // pred_check_branch
    %27 = sbr.rel (0) target = $region29
  $region28: #{irl_neighbor_forward.1} parent=0 // pred_region
    _
  $region29: #{irl_neighbor_forward.1} parent=0 // pred_fallthru
    _
  %v29 = vld [vmem:[%s1] sm:$0xf]
  %v30 = vld [vmem:[%s1 + $0x4] sm:$0xf]
  %v31 = vld [vmem:[%s1 + $0x8] sm:$0xf]
  %v32 = vld [vmem:[%s0] sm:$0xf]
  %v33 = vld [vmem:[%s0 + $0x4] sm:$0xf]
  %v34 = vld [vmem:[%s0 + $0x8] sm:$0xf]
  %v35 = vld [vmem:[%s0 + $0xc] sm:$0xf]
  %v36 = vld [vmem:[%s2] sm:$0xff]
  %v37 = vld [vmem:[%s2 + $0x8] sm:$0xff]
  %v38 = vld [vmem:[%s2 + $0x10] sm:$0xff]
  %40 = vset.pattern.permute.xlu0 0
  %41 = vperm.xlu0 %40, %v36
  %v42 = vpop.permute.xlu0 %41
  %45 = vset.pattern.permute.xlu0 0
  %46 = vperm.xlu0 %45, %v37
  %v47 = vpop.permute.xlu0 %46
  %50 = vset.pattern.permute.xlu0 0
  %51 = vperm.xlu0 %50, %v38
  %v52 = vpop.permute.xlu0 %51
  %v57 = vunpack.c.l.b16 %v29
  %v58 = vunpack.c.l.b16 %v30
  %v59 = vunpack.c.l.b16 %v31
  %v60 = vpack.c.b16 %v58, %v57
  %v61 = vpack.c.b16 %v59, %v59
  %v66 = vunpack.c.l.b16 %v32
  %v67 = vunpack.c.l.b16 %v33
  %v68 = vunpack.c.l.b16 %v34
  %v69 = vunpack.c.l.b16 %v35
  %v70 = vpack.c.b16 %v67, %v66
  %v71 = vpack.c.b16 %v69, %v68
  %vm74 = vcmask 261120
  %v76 = vsel %vm74, %v60, 0
  %v79 = vsel %vm74, %v61, 0
  %81 = vmatprep.subr.bf16.mxu0 0
  %82 = vmatpush1.bf16.msra.mxu0 %v70
  %83 = vmatprep.subr.bf16.mxu0 0
  %84 = vmatpush1.bf16.msra.mxu0 %v71
  %85 = vmatprep.subr.bf16.mxu0 0
  %86 = vmatpush1.bf16.msra.mxu0 0
  %87 = vmatprep.subr.bf16.mxu0 0
  %88 = vmatpush1.bf16.msra.mxu0 0
  %89 = vmatprep.subr.bf16.mxu0 0
  %90 = vmatpush1.bf16.msra.mxu0 0
  %91 = vmatprep.subr.bf16.mxu0 0
  %92 = vmatpush1.bf16.msra.mxu0 0
  %93 = vmatprep.subr.bf16.mxu0 0
  %94 = vmatpush1.bf16.msra.mxu0 0
  %95 = vmatprep.subr.bf16.mxu0 0
  %96 = vmatpush1.bf16.msra.mxu0 0
  %97 = vmatprep.subr.bf16.mxu0 0
  %98 = vmatpush1.bf16.msra.mxu0 0
  %99 = vmatprep.subr.bf16.mxu0 0
  %100 = vmatpush1.bf16.msra.mxu0 0
  %101 = vmatprep.subr.bf16.mxu0 0
  %102 = vmatpush1.bf16.msra.mxu0 0
  %103 = vmatprep.subr.bf16.mxu0 0
  %104 = vmatpush1.bf16.msra.mxu0 0
  %105 = vmatprep.subr.bf16.mxu0 0
  %106 = vmatpush1.bf16.msra.mxu0 0
  %107 = vmatprep.subr.bf16.mxu0 0
  %108 = vmatpush1.bf16.msra.mxu0 0
  %109 = vmatprep.subr.bf16.mxu0 0
  %110 = vmatpush1.bf16.msra.mxu0 0
  %111 = vmatprep.subr.bf16.mxu0 0
  %112 = vmatpush1.bf16.msra.mxu0 0
  %113 = vmatprep.mubr.bf16.mxu0 0
  %114 = vmatmul.mubr.bf16.gmra.mrb[0].mxu0 %v76
  %v115 = vpop.f32.mrb[0].mxu0
  %v116 = vadd.f32 %v42, %v115
  %v117 = vpop.f32.mrb[0].mxu0
  %v118 = vpop.f32.mrb[0].mxu0
  %v119 = vadd.f32 %v47, %v118
  %v120 = vpop.f32.mrb[0].mxu0
  %121 = vmatprep.mubr.bf16.mxu0 0
  %122 = vmatmul.mubr.bf16.gmra.mrb[0].mxu0 %v79
  %v123 = vpop.f32.mrb[0].mxu0
  %v124 = vadd.f32 %v52, %v123
  %v125 = vpop.f32.mrb[0].mxu0
  %v126 = vpop.f32.mrb[0].mxu0
  %v127 = vpop.f32.mrb[0].mxu0
  %128 = vdwg.mxu0
  %v129 = vmax.f32 %v116, 0.0
  %v130 = vmax.f32 %v119, 0.0
  %v131 = vmax.f32 %v124, 0.0
  %v132 = vld [vmem:[%s3] sm:$0xff]
  %v133 = vld [vmem:[%s3 + $0x8] sm:$0xff]
  %v134 = vld [vmem:[%s4] sm:$0xff]
  %v135 = vld [vmem:[%s4 + $0x8] sm:$0xff]
  %137 = vset.pattern.permute.xlu0 0
  %138 = vperm.xlu0 %137, %v134
  %v139 = vpop.permute.xlu0 %138
  %142 = vset.pattern.permute.xlu0 0
  %143 = vperm.xlu0 %142, %v135
  %v144 = vpop.permute.xlu0 %143
  %vm146 = vcmask 195584
  %v148 = vsel %vm146, %v132, 0
  %v151 = vsel %vm146, %v133, 0
  %153 = vmatprep.subr.mxu0 0.0
  %154 = vmatpush1.msra.mxu0 %v129
  %155 = vmatprep.subr.mxu0 0.0
  %156 = vmatpush1.msra.mxu0 %v130
  %157 = vmatprep.subr.mxu0 0.0
  %158 = vmatpush1.msra.mxu0 %v131
  %159 = vmatprep.subr.mxu0 0.0
  %160 = vmatpush1.msra.mxu0 0.0
  %161 = vmatprep.subr.mxu0 0.0
  %162 = vmatpush1.msra.mxu0 0.0
  %163 = vmatprep.subr.mxu0 0.0
  %164 = vmatpush1.msra.mxu0 0.0
  %165 = vmatprep.subr.mxu0 0.0
  %166 = vmatpush1.msra.mxu0 0.0
  %167 = vmatprep.subr.mxu0 0.0
  %168 = vmatpush1.msra.mxu0 0.0
  %169 = vmatprep.subr.mxu0 0.0
  %170 = vmatpush1.msra.mxu0 0.0
  %171 = vmatprep.subr.mxu0 0.0
  %172 = vmatpush1.msra.mxu0 0.0
  %173 = vmatprep.subr.mxu0 0.0
  %174 = vmatpush1.msra.mxu0 0.0
  %175 = vmatprep.subr.mxu0 0.0
  %176 = vmatpush1.msra.mxu0 0.0
  %177 = vmatprep.subr.mxu0 0.0
  %178 = vmatpush1.msra.mxu0 0.0
  %179 = vmatprep.subr.mxu0 0.0
  %180 = vmatpush1.msra.mxu0 0.0
  %181 = vmatprep.subr.mxu0 0.0
  %182 = vmatpush1.msra.mxu0 0.0
  %183 = vmatprep.subr.mxu0 0.0
  %184 = vmatpush1.msra.mxu0 0.0
  %185 = vmatprep.subr.mxu0 0.0
  %186 = vmatpush1.msra.mxu0 0.0
  %187 = vmatprep.subr.mxu0 0.0
  %188 = vmatpush1.msra.mxu0 0.0
  %189 = vmatprep.subr.mxu0 0.0
  %190 = vmatpush1.msra.mxu0 0.0
  %191 = vmatprep.subr.mxu0 0.0
  %192 = vmatpush1.msra.mxu0 0.0
  %193 = vmatprep.subr.mxu0 0.0
  %194 = vmatpush1.msra.mxu0 0.0
  %195 = vmatprep.subr.mxu0 0.0
  %196 = vmatpush1.msra.mxu0 0.0
  %197 = vmatprep.subr.mxu0 0.0
  %198 = vmatpush1.msra.mxu0 0.0
  %199 = vmatprep.subr.mxu0 0.0
  %200 = vmatpush1.msra.mxu0 0.0
  %201 = vmatprep.subr.mxu0 0.0
  %202 = vmatpush1.msra.mxu0 0.0
  %203 = vmatprep.subr.mxu0 0.0
  %204 = vmatpush1.msra.mxu0 0.0
  %205 = vmatprep.subr.mxu0 0.0
  %206 = vmatpush1.msra.mxu0 0.0
  %207 = vmatprep.subr.mxu0 0.0
  %208 = vmatpush1.msra.mxu0 0.0
  %209 = vmatprep.subr.mxu0 0.0
  %210 = vmatpush1.msra.mxu0 0.0
  %211 = vmatprep.subr.mxu0 0.0
  %212 = vmatpush1.msra.mxu0 0.0
  %213 = vmatprep.subr.mxu0 0.0
  %214 = vmatpush1.msra.mxu0 0.0
  %215 = vmatprep.subr.mxu0 0.0
  %216 = vmatpush1.msra.mxu0 0.0
  %217 = vmatprep.mubr.f32.mxu0 0.0
  %218 = vmatmul.mubr.f32.gmra.mrb[0].mxu0 %v148
  %v219 = vpop.f32.mrb[0].mxu0
  %v220 = vadd.f32 %v139, %v219
  %v221 = vpop.f32.mrb[0].mxu0
  %222 = vmatprep.mubr.f32.mxu0 0.0
  %223 = vmatmul.mubr.f32.gmra.mrb[0].mxu0 %v151
  %v224 = vpop.f32.mrb[0].mxu0
  %v225 = vadd.f32 %v144, %v224
  %v226 = vpop.f32.mrb[0].mxu0
  %227 = vdwg.mxu0
  %v228 = vmax.f32 %v220, 0.0
  %v229 = vmax.f32 %v225, 0.0
  %v230 = vld [vmem:[%s5] sm:$0xff]
  %v231 = vld [vmem:[%s5 + $0x8] sm:$0xff]
  %233 = vset.pattern.permute.xlu0 0
  %234 = vperm.xlu0 %233, %v230
  %v235 = vpop.permute.xlu0 %234
  %238 = vset.pattern.permute.xlu0 0
  %239 = vperm.xlu0 %238, %v231
  %v240 = vpop.permute.xlu0 %239
  %v242 = vmul.f32 %v235, %v228
  %v243 = vmul.f32 %v240, %v229
  %v244 = vadd.f32 %v242, %v243
  %v245 = vrot.slane %v244, 4
  %v246 = vadd.f32 %v244, %v245
  %v247 = vrot.slane %v246, 2
  %v248 = vadd.f32 %v246, %v247
  %v249 = vrot.slane %v248, 1
  %v250 = vadd.f32 %v248, %v249
  %v251 = vld [vmem:[#allocation2] sm:$0x1]
  %253 = vset.pattern.permute.xlu0 0
  %254 = vperm.xlu0 %253, %v251
  %v255 = vpop.permute.xlu0 %254
  %v257 = vlaneseq
  %v258 = vshrl.u32 %v257, 7
  %v259 = vsub.s32 0, %v258
  %v260 = vrot.slane %v255, %v259
  %v261 = vadd.f32 %v250, %v260
  %v262 = vmax.f32 %v261, 0.0
  %263 = vst [vmem:[%s7] sm:$0x1] %v262
  // Predicated region
  $region30: #{irl_neighbor_forward.1} parent=0 // pred_check
    _
  $region31: #{irl_neighbor_forward.1} parent=0 // pred_check_branch
    %265 = sbr.rel (0) target = $region33
  $region32: #{irl_neighbor_forward.1} parent=0 // pred_region
    _
  $region33: #{irl_neighbor_forward.1} parent=0 // pred_fallthru
    _
  // Predicated region
  $region34: #{irl_neighbor_forward.1} parent=0 // pred_check
    _
  $region35: #{irl_neighbor_forward.1} parent=0 // pred_check_branch
    %267 = sbr.rel (0) target = $region37
  $region36: #{irl_neighbor_forward.1} parent=0 // pred_region
    _
  $region37: #{irl_neighbor_forward.1} parent=0 // pred_fallthru
    _

</llo_original>
